<compile_context>
chip_gen: v7x
topology: tpu7x:2x2x1
jax: 0.10.0
libtpu: 0.0.40
codegen_flags: <defaults>
</compile_context>

<pallas_src>
import functools

import jax
import jax.numpy as jnp
from jax.experimental import pallas as pl
from jax.experimental.pallas import tpu as pltpu


# Conservative estimate of live [TB, C] f32 compute planes inside the kernel
# (casted s/t, e, e*t, w and the w*s product chain).
_F32_TEMP_PLANES = 5


def _round_up(x, m):
    return ((x + m - 1) // m) * m


def _sublane_rows(scores_dtype, target_dtype):
    s_b = jnp.dtype(scores_dtype).itemsize
    t_b = jnp.dtype(target_dtype).itemsize
    # 8 rows for 4-byte, 16 for 2-byte, 32 for 1-byte inputs.
    return max(8, 32 // min(s_b, t_b))


def _per_row_bytes(C, scores_dtype, target_dtype):
    s_b = jnp.dtype(scores_dtype).itemsize
    t_b = jnp.dtype(target_dtype).itemsize
    # 2x double-buffered input rows + f32 compute planes inside the kernel.
    return C * (2 * (s_b + t_b) + 4 * _F32_TEMP_PLANES)


def _vmem_plan():
    """(physical_vmem, scoped_limit, tile_byte_budget) for the local chip."""
    phys = 64 * 1024 * 1024                 # assume the tightest gen (v7x per-TC)
    try:
        info = pltpu.get_tpu_info()
        phys = int(getattr(info, "vmem_capacity_bytes", phys))
    except Exception:
        pass
    scoped = min(phys // 2, 64 * 1024 * 1024)   # v7x -> 32 MiB, v5e/v6e -> 64 MiB
    budget = (scoped * 3) // 4                  # headroom for spills / metadata
    return phys, scoped, budget


def _choose_tile_rows(B, C, scores_dtype, target_dtype, budget_bytes):
    sub = _sublane_rows(scores_dtype, target_dtype)
    per_row = _per_row_bytes(C, scores_dtype, target_dtype)
    rows = max(sub, (budget_bytes // max(per_row, 1)) // sub * sub)
    if B >= 2 * sub:
        # v7x megacore: keep at least two grid programs (one per TensorCore);
        # best-effort even tile count so both cores get equal work.
        rows = min(rows, _round_up(pl.cdiv(B, 2), sub))
        nt = pl.cdiv(B, rows)
        if nt > 1 and nt % 2 == 1:
            rows = max(sub, _round_up(pl.cdiv(B, nt + 1), sub))
    if rows >= B:
        rows = B                            # single full-extent block (always legal)
    return int(rows)


def _softce_tile_kernel(scores_ref, target_ref, out_ref, *, valid_rows, tile_rows):
    """Per-row masked-softmax CE contribution for one [TB, C] tile."""
    s = scores_ref[...].astype(jnp.float32)                   # [TB, C]
    t = target_ref[...].astype(jnp.float32)                   # [TB, C]

    # Masked, max-stabilized softmax pieces over classes (axis=1).
    m = jnp.max(s, axis=1, keepdims=True)                     # [TB, 1]
    e = jnp.exp(s - m)                                         # [TB, C]
    et = e * t                                                 # [TB, C]
    denom = jnp.sum(et, axis=1, keepdims=True)                 # [TB, 1]
    lse = jnp.log(jnp.sum(e, axis=1, keepdims=True)) + m       # [TB, 1]

    # CE row numerator with logp = s - lse factored out of the [TB, C] plane:
    #   sum(p * logp * t) * denom = sum(e*t^2*(s - lse)) = sum(w*s) - lse*sum(w)
    # (keeps the extra *t so soft / non-binary targets match the PyTorch module).
    w = et * t                                                 # e * t^2
    num = (jnp.sum(w * s, axis=1, keepdims=True)
           - lse * jnp.sum(w, axis=1, keepdims=True))          # [TB, 1]
    row_loss = -(num / denom)                                  # one divide per row

    # Zero out padded rows of the last (partial) tile.
    row_start = pl.program_id(0) * tile_rows
    row_ids = row_start + jax.lax.broadcasted_iota(jnp.int32, (tile_rows, 1), 0)
    out_ref[...] = jnp.where(row_ids < valid_rows, row_loss, 0.0)


def soft_ce_s(scores, target, if_average=False, tile_rows=None):
    """Pallas implementation of softCE_S.forward(scores, target)."""
    B, C = scores.shape
    assert target.shape == (B, C)

    phys, scoped_limit, budget = _vmem_plan()
    if tile_rows is None:
        tile_rows = _choose_tile_rows(B, C, scores.dtype, target.dtype, budget)

    # Scoped-VMEM limit: at least the estimated per-step footprint (covers the
    # large-C corner where even a minimum-height tile exceeds the default),
    # capped well below physical VMEM.
    est = _per_row_bytes(C, scores.dtype, target.dtype) * tile_rows + (4 << 20)
    vmem_limit = int(min(max(scoped_limit, est), max(scoped_limit, phys * 7 // 8)))
    # TODO(synk): for very large C (e.g. >=64K classes) a class-axis grid with an
    # online max/sum (flash-softmax style) is needed instead of taller tiles.

    grid = (pl.cdiv(B, tile_rows),)
    kernel = functools.partial(
        _softce_tile_kernel, valid_rows=B, tile_rows=tile_rows)

    partials = pl.pallas_call(
        kernel,
        grid=grid,
        in_specs=[
            pl.BlockSpec((tile_rows, C), lambda i: (i, 0)),
            pl.BlockSpec((tile_rows, C), lambda i: (i, 0)),
        ],
        # Output is ~2C x smaller than the streamed inputs, so the (TB, 1)
        # store (and the tiny XLA sum below) is negligible vs. the input DMA.
        out_specs=pl.BlockSpec((tile_rows, 1), lambda i: (i, 0)),
        out_shape=jax.ShapeDtypeStruct((B, 1), jnp.float32),
        compiler_params=pltpu.CompilerParams(
            dimension_semantics=("parallel",),
            vmem_limit_bytes=vmem_limit),
    )(scores, target)

    ce = jnp.sum(partials)
    if if_average:
        ce = ce / B
    return ce


def _reference(scores, target, if_average=False):
    # Pure-JAX reference mirroring the PyTorch module.
    s = scores.astype(jnp.float32)
    t = target.astype(jnp.float32)
    m = jnp.max(s, axis=1, keepdims=True)
    e = jnp.exp(s - m)
    p = (e * t) / jnp.sum(e * t, axis=1, keepdims=True)
    logp = s - (jnp.log(jnp.sum(e, axis=1, keepdims=True)) + m)
    ce = -jnp.sum(p * logp * t)
    if if_average:
        ce = ce / s.shape[0]
    return ce


if __name__ == "__main__":
    key = jax.random.PRNGKey(0)
    k1, k2, k3, k4 = jax.random.split(key, 4)

    # Case 1: small shape, single full-extent block.
    B1, C1 = 8, 128
    s1 = jax.random.normal(k1, (B1, C1), dtype=jnp.float32)
    m1 = (jax.random.uniform(k2, (B1, C1)) < 0.3).astype(jnp.float32)
    m1 = m1.at[:, 0].set(1.0)     # every row has >=1 active class (avoid 0/0)
    out1 = jax.block_until_ready(soft_ce_s(s1, m1, if_average=False))
    ref1 = _reference(s1, m1, if_average=False)
    assert jnp.allclose(out1, ref1, rtol=1e-4, atol=1e-4), (out1, ref1)

    # Case 2: auto tile sizing -> >=2 grid programs, partial last tile.
    B2, C2 = 40, 256
    s2 = jax.random.normal(k3, (B2, C2), dtype=jnp.float32)
    m2 = (jax.random.uniform(k4, (B2, C2)) < 0.3).astype(jnp.float32)
    m2 = m2.at[:, 0].set(1.0)
    out2 = jax.block_until_ready(soft_ce_s(s2, m2, if_average=True))
    ref2 = _reference(s2, m2, if_average=True)
    assert jnp.allclose(out2, ref2, rtol=1e-4, atol=1e-4), (out2, ref2)

    # Case 3: narrowed target dtype (bf16 binary mask) -> ~25% less HBM traffic,
    # explicit tile_rows exercising a 3-program grid with a partial tile.
    out3 = jax.block_until_ready(
        soft_ce_s(s2, m2.astype(jnp.bfloat16), if_average=True, tile_rows=16))
    assert jnp.allclose(out3, ref2, rtol=1e-4, atol=1e-4), (out3, ref2)

    print("KERNEL_OK")
</pallas_src>

<mosaic_0001>
module attributes {stable_mosaic.version = 11 : i64} {
  func.func @_softce_tile_kernel(%arg0: i32, %arg1: memref<8x128xf32, #tpu.memory_space<vmem>>, %arg2: memref<8x128xf32, #tpu.memory_space<vmem>>, %arg3: memref<8x1xf32, #tpu.memory_space<vmem>>) attributes {dimension_semantics = [#tpu.dimension_semantics<parallel>], iteration_bounds = array<i64: 1>, scalar_prefetch = 0 : i64, scratch_operands = 0 : i64, tpu.core_type = #tpu.core_type<tc>, window_params = [{transform_indices = @transform_0, window_bounds = array<i64: 8, 128>}, {transform_indices = @transform_1, window_bounds = array<i64: 8, 128>}, {transform_indices = @transform_2, window_bounds = array<i64: 8, 1>}]} {
    %c0 = arith.constant 0 : index
    %c0_0 = arith.constant 0 : index
    %0 = vector.load %arg1[%c0, %c0_0] : memref<8x128xf32, #tpu.memory_space<vmem>>, vector<8x128xf32>
    %c0_1 = arith.constant 0 : index
    %c0_2 = arith.constant 0 : index
    %1 = vector.load %arg2[%c0_1, %c0_2] : memref<8x128xf32, #tpu.memory_space<vmem>>, vector<8x128xf32>
    %cst = arith.constant dense<0xFF800000> : vector<8xf32>
    %2 = vector.multi_reduction <maximumf>, %0, %cst [1] : vector<8x128xf32> to vector<8xf32>
    %3 = vector.shape_cast %2 : vector<8xf32> to vector<8x1xf32>
    %4 = vector.broadcast %3 : vector<8x1xf32> to vector<8x128xf32>
    %5 = arith.subf %0, %4 : vector<8x128xf32>
    %6 = math.exp %5 : vector<8x128xf32>
    %7 = arith.mulf %6, %1 : vector<8x128xf32>
    %cst_3 = arith.constant dense<0.000000e+00> : vector<8xf32>
    %8 = vector.multi_reduction <add>, %7, %cst_3 [1] : vector<8x128xf32> to vector<8xf32>
    %9 = vector.shape_cast %8 : vector<8xf32> to vector<8x1xf32>
    %cst_4 = arith.constant dense<0.000000e+00> : vector<8xf32>
    %10 = vector.multi_reduction <add>, %6, %cst_4 [1] : vector<8x128xf32> to vector<8xf32>
    %11 = vector.shape_cast %10 : vector<8xf32> to vector<8x1xf32>
    %12 = math.log %11 : vector<8x1xf32>
    %13 = arith.addf %12, %3 : vector<8x1xf32>
    %14 = arith.mulf %7, %1 : vector<8x128xf32>
    %15 = arith.mulf %14, %0 : vector<8x128xf32>
    %cst_5 = arith.constant dense<0.000000e+00> : vector<8xf32>
    %16 = vector.multi_reduction <add>, %15, %cst_5 [1] : vector<8x128xf32> to vector<8xf32>
    %17 = vector.shape_cast %16 : vector<8xf32> to vector<8x1xf32>
    %cst_6 = arith.constant dense<0.000000e+00> : vector<8xf32>
    %18 = vector.multi_reduction <add>, %14, %cst_6 [1] : vector<8x128xf32> to vector<8xf32>
    %19 = vector.shape_cast %18 : vector<8xf32> to vector<8x1xf32>
    %20 = arith.mulf %13, %19 : vector<8x1xf32>
    %21 = arith.subf %17, %20 : vector<8x1xf32>
    %22 = arith.divf %21, %9 : vector<8x1xf32>
    %cst_7 = arith.constant 0.000000e+00 : f32
    %23 = vector.broadcast %cst_7 : f32 to vector<8x1xf32>
    %24 = arith.subf %23, %22 : vector<8x1xf32>
    %c8_i32 = arith.constant 8 : i32
    %25 = arith.muli %arg0, %c8_i32 : i32
    %26 = tpu.iota {dimensions = array<i32: 0>} : vector<8x1xi32>
    %27 = vector.broadcast %25 : i32 to vector<8x1xi32>
    %28 = arith.addi %27, %26 : vector<8x1xi32>
    %c8_i32_8 = arith.constant 8 : i32
    %29 = vector.broadcast %c8_i32_8 : i32 to vector<8x1xi32>
    %30 = arith.cmpi slt, %28, %29 : vector<8x1xi32>
    %cst_9 = arith.constant 0.000000e+00 : f32
    %31 = vector.broadcast %cst_9 : f32 to vector<8x1xf32>
    %32 = arith.select %30, %24, %31 : vector<8x1xi1>, vector<8x1xf32>
    %c0_10 = arith.constant 0 : index
    %c0_11 = arith.constant 0 : index
    %33 = vector.load %arg3[%c0_10, %c0_11] : memref<8x1xf32, #tpu.memory_space<vmem>>, vector<8x1xf32>
    tpu.vector_store %arg3[%c0_10, %c0_11], %32 {strides = array<i32>} : memref<8x1xf32, #tpu.memory_space<vmem>>, vector<8x1xf32>,
    return
  }
  func.func @transform_0(%arg0: i32) -> (i32, i32) {
    %c0_i32 = arith.constant 0 : i32
    %c0_i32_0 = arith.constant 0 : i32
    return %arg0, %c0_i32 : i32, i32
  }
  func.func @transform_1(%arg0: i32) -> (i32, i32) {
    %c0_i32 = arith.constant 0 : i32
    %c0_i32_0 = arith.constant 0 : i32
    return %arg0, %c0_i32 : i32, i32
  }
  func.func @transform_2(%arg0: i32) -> (i32, i32) {
    %c0_i32 = arith.constant 0 : i32
    %c0_i32_0 = arith.constant 0 : i32
    return %arg0, %c0_i32 : i32, i32
  }
}

</mosaic_0001>

<llo_original>
// kernel: tpu_custom_call.1
$region0: #{tpu_custom_call.1}
  #allocation0 [shape = 'u32[]', space=smem, size = 0x4, offset = 0x4, fixed_abs, tag = 'smem constant byte address 0x4 - core index']
  #allocation1 [shape = 'u32[144,128]{1,0:T(1,128)}', space=vmem, size = 0x12000, scoped, tag = 'internal scratch']
  %s0 = inlined_call_operand.hbm [shape: f32[8,128], index: 0, kind: input, shape index: {}]
  %s1 = inlined_call_operand.hbm [shape: f32[8,128], index: 1, kind: input, shape index: {}]
  %s2 = inlined_call_operand.vmem [shape: f32[8,1], index: 2, kind: output, shape index: {}]
  %s3 = sld [smem:[#allocation0]]
  $region26: #{tpu_custom_call.1} parent=0
    _
  %s5 = ssub.s32 1, %s3
  %s6 = scalar_select 0, %s5, %s3
  $region1: #{tpu_custom_call.1} parent=0
    #allocation2 [shape = 'u8[4096]{0}', space=vmem, size = 0x1000, scoped, tag = 'input window, operand 0, single buffered']
    #allocation3 [shape = 's32[1]{0}', space=sflag, size = 0x4, scoped, tag = 'scoped memory for tpu_custom_call.1']
    #allocation4 [shape = 'u8[4096]{0}', space=vmem, size = 0x1000, scoped, tag = 'input window, operand 1, single buffered']
    #allocation5 [shape = 's32[1]{0}', space=sflag, size = 0x4, scoped, tag = 'scoped memory for tpu_custom_call.1']
    %7 = vsyncpa [#allocation3], 0
    %8 = vsyncpa [#allocation5], 0
    // Predicated region
    $region2: #{tpu_custom_call.1} parent=1 // pred_check
      _
    $region3: #{tpu_custom_call.1} parent=1 // pred_check_branch
      %10 = sbr.rel (0) target = $region5
    $region4: #{tpu_custom_call.1} parent=1 // pred_region
      %s12 = ssub.s32 128, 128
      %13 = vsyncadd [#allocation3], %s12
      %s15 = sshll.u32 [#allocation2], 4
      %s16 = int_to_ptr.vmem [resolvable:$true] %s15
      %18 = dma.hbm_to_vmem [thread:$0]  %s0, 128, %s16, [#allocation3]
    $region5: #{tpu_custom_call.1} parent=1 // pred_fallthru
      _
    // Predicated region
    $region6: #{tpu_custom_call.1} parent=1 // pred_check
      _
    $region7: #{tpu_custom_call.1} parent=1 // pred_check_branch
      %20 = sbr.rel (0) target = $region9
    $region8: #{tpu_custom_call.1} parent=1 // pred_region
      %s22 = ssub.s32 128, 128
      %23 = vsyncadd [#allocation5], %s22
      %s25 = sshll.u32 [#allocation4], 4
      %s26 = int_to_ptr.vmem [resolvable:$true] %s25
      %28 = dma.hbm_to_vmem [thread:$0]  %s1, 128, %s26, [#allocation5]
    $region9: #{tpu_custom_call.1} parent=1 // pred_fallthru
      _
    // Predicated region
    $region10: #{tpu_custom_call.1} parent=1 // pred_check
      _
    $region11: #{tpu_custom_call.1} parent=1 // pred_check_branch
      %30 = sbr.rel (0) target = $region13
    $region12: #{tpu_custom_call.1} parent=1 // pred_region
      %31 = dma.done [#allocation3], 128
    $region13: #{tpu_custom_call.1} parent=1 // pred_fallthru
      _
    // Predicated region
    $region14: #{tpu_custom_call.1} parent=1 // pred_check
      _
    $region15: #{tpu_custom_call.1} parent=1 // pred_check_branch
      %33 = sbr.rel (0) target = $region17
    $region16: #{tpu_custom_call.1} parent=1 // pred_region
      %34 = dma.done [#allocation5], 128
    $region17: #{tpu_custom_call.1} parent=1 // pred_fallthru
      _
    %v35 = vld [vmem:[#allocation2] sm:$0xff]
    %v36 = vld [vmem:[#allocation4] sm:$0xff]
    %37 = vmax.xlane.f32.xlu0 %v35
    %v38 = vpop.xlane.xlu0 %37
    %v39 = vsub.f32 %v35, %v38
    %v40 = vmul.f32 %v39, 1.442695
    %v41 = vpow.pop %v40
    %v42 = vmul.f32 %v41, %v36
    %43 = vadd.xlane.f32.xlu0 %v42
    %v44 = vpop.xlane.xlu0 %43
    %45 = vadd.xlane.f32.xlu0 %v41
    %v46 = vpop.xlane.xlu0 %45
    %v47 = vlog2.pop %v46
    %v48 = vmul.f32 %v47, 0.6931472
    %v49 = vadd.f32 %v48, %v38
    %v50 = vmul.f32 %v42, %v36
    %v51 = vmul.f32 %v50, %v35
    %52 = vadd.xlane.f32.xlu0 %v51
    %v53 = vpop.xlane.xlu0 %52
    %54 = vadd.xlane.f32.xlu0 %v50
    %v55 = vpop.xlane.xlu0 %54
    %v56 = vmul.f32 %v49, %v55
    %v57 = vsub.f32 %v53, %v56
    %v58 = vrcp.pop %v44
    %v59 = vmul.f32 %v57, %v58
    %v60 = vsub.f32 0.0, %v59
    %s61 = smul.u32 0, 8
    %v62 = vlaneseq
    %v63 = vshrl.u32 %v62, 7
    %v64 = vstv %s61
    %v65 = vadd.s32 %v64, %v63
    %vm66 = vcmp.lt.s32.totalorder %v65, 8
    %v67 = vsel %vm66, %v60, 0.0
    %vm68 = vcmask 7168
    %69 = vst.msk [vmem:[%s2] sm:$0xff] %vm68, %v67
    // Predicated region
    $region18: #{tpu_custom_call.1} parent=1 // pred_check
      _
    $region19: #{tpu_custom_call.1} parent=1 // pred_check_branch
      %71 = sbr.rel (0) target = $region21
    $region20: #{tpu_custom_call.1} parent=1 // pred_region
      _
    $region21: #{tpu_custom_call.1} parent=1 // pred_fallthru
      _
    // Predicated region
    $region22: #{tpu_custom_call.1} parent=1 // pred_check
      _
    $region23: #{tpu_custom_call.1} parent=1 // pred_check_branch
      %73 = sbr.rel (0) target = $region25
    $region24: #{tpu_custom_call.1} parent=1 // pred_region
      _
    $region25: #{tpu_custom_call.1} parent=1 // pred_fallthru
      _
    %74 = vsyncpa [#allocation3], 1
    %75 = vsyncpa [#allocation5], 1

</llo_original>
